<compile_context>
chip_gen: v7x
topology: tpu7x:2x2x1
jax: 0.10.0
libtpu: 0.0.40
codegen_flags: <defaults>
</compile_context>

<pallas_src>
import jax
import jax.numpy as jnp
from jax.experimental import pallas as pl
from jax.experimental.pallas import tpu as pltpu


def _identity_kernel(x_ref, o_ref):
    # p = 0.0  =>  keep probability 1.0, no masking, no scaling: identity.
    # TODO(synk): for p > 0, seed per block with
    #   pltpu.prng_seed(seed + pl.program_id(0))
    # draw pltpu.prng_random_bits(block_shape), build the keep-mask with an
    # integer threshold compare, and fold the 1/(1-p) scale into the
    # jnp.where (hoisted, not re-broadcast per grid step).
    o_ref[...] = x_ref[...]


def _choose_tile_r(rows: int, c: int, itemsize: int) -> int:
    """Row-tile size for the (rows, C) stream.

    Budget: 2 input + 2 output double buffers must fit v5e's 16 MiB scoped
    VMEM default (smallest of v5e/v6e/v7x); derived from C so wide channels
    don't overshoot v7x's 64 MiB physical VMEM either.
    """
    sublane = {4: 8, 2: 16, 1: 32}.get(itemsize, 8)
    per_buffer_bytes = (16 << 20) // 4
    cap = max(sublane, (per_buffer_bytes // (c * itemsize)) // sublane * sublane)

    if rows <= 512:
        # Small activation (e.g. the (49, 768) case): one full-extent block.
        # block_shape == full array dim, so the (8,128) rule is satisfied.
        return rows

    # Large activation: force >= 2 blocks so ("parallel",) semantics can
    # shard across v7x's 2 TensorCores, and cap by the VMEM budget.
    half = -(-rows // 2)                       # ceil(rows / 2)
    half = -(-half // sublane) * sublane       # round up to sublane multiple
    return max(sublane, min(cap, half, rows))


def _identity_copy_pallas(x: jax.Array) -> jax.Array:
    """Identity pass routed HBM -> VMEM -> HBM through a Pallas kernel.

    Kept only as the plumbing template for a real (p > 0) dropout.  Accepts
    any rank; internally flattens to (rows, C) with C (last dim) on lanes.
    """
    orig_shape = x.shape
    c = orig_shape[-1]
    rows = 1
    for d in orig_shape[:-1]:
        rows *= d
    x2d = x.reshape(rows, c)

    itemsize = jnp.dtype(x.dtype).itemsize
    tile_r = _choose_tile_r(rows, c, itemsize)
    grid = (pl.cdiv(rows, tile_r),)

    out = pl.pallas_call(
        _identity_kernel,
        out_shape=jax.ShapeDtypeStruct((rows, c), x.dtype),
        grid_spec=pl.GridSpec(
            grid=grid,
            in_specs=[pl.BlockSpec((tile_r, c), lambda i: (i, 0))],
            out_specs=pl.BlockSpec((tile_r, c), lambda i: (i, 0)),
        ),
        # Pure memory op: 0 flops, reads + writes every byte once.
        cost_estimate=pl.CostEstimate(
            flops=0,
            transcendentals=0,
            bytes_accessed=2 * rows * c * itemsize,
        ),
        compiler_params=pltpu.CompilerParams(
            dimension_semantics=("parallel",),
        ),
    )(x2d)

    return out.reshape(orig_shape)


def dropout_p0(x: jax.Array) -> jax.Array:
    """Forward of M: Dropout(p=0.0) == identity.

    Trace-time short-circuit (the review's top optimization): with p == 0.0
    there is no mask and no scaling, so return x with zero HBM traffic and
    zero kernel-launch overhead.
    """
    return x


if __name__ == "__main__":
    key = jax.random.PRNGKey(0)
    # Shape implied by the module's forward: (1, 7, 7, 768)
    x553 = jax.random.normal(key, (1, 7, 7, 768), dtype=jnp.float32)

    # Module forward (short-circuited identity) — the production path.
    x554 = dropout_p0(x553)
    jax.block_until_ready(x554)

    # Exercise the retained Pallas template once to prove it compiles and
    # runs cleanly on TPU and matches the identity semantics.  No aliasing,
    # so comparing against x553 afterwards is safe.
    x554_kernel = _identity_copy_pallas(x553)
    jax.block_until_ready(x554_kernel)

    assert x554.shape == x553.shape
    assert x554.dtype == x553.dtype
    assert bool(jnp.all(x554 == x553))
    assert x554_kernel.shape == x553.shape
    assert x554_kernel.dtype == x553.dtype
    assert bool(jnp.all(x554_kernel == x553))

    print("KERNEL_OK")
</pallas_src>

<mosaic_0001>
module attributes {stable_mosaic.version = 11 : i64} {
  func.func @_identity_kernel(%arg0: i32, %arg1: memref<49x768xf32, #tpu.memory_space<vmem>>, %arg2: memref<49x768xf32, #tpu.memory_space<vmem>>) attributes {dimension_semantics = [#tpu.dimension_semantics<parallel>], iteration_bounds = array<i64: 1>, scalar_prefetch = 0 : i64, scratch_operands = 0 : i64, tpu.core_type = #tpu.core_type<tc>, window_params = [{transform_indices = @transform_0, window_bounds = array<i64: 49, 768>}, {transform_indices = @transform_1, window_bounds = array<i64: 49, 768>}]} {
    %c0 = arith.constant 0 : index
    %c0_0 = arith.constant 0 : index
    %0 = vector.load %arg1[%c0, %c0_0] : memref<49x768xf32, #tpu.memory_space<vmem>>, vector<49x768xf32>
    %c0_1 = arith.constant 0 : index
    %c0_2 = arith.constant 0 : index
    %1 = vector.load %arg2[%c0_1, %c0_2] : memref<49x768xf32, #tpu.memory_space<vmem>>, vector<49x768xf32>
    tpu.vector_store %arg2[%c0_1, %c0_2], %0 {strides = array<i32>} : memref<49x768xf32, #tpu.memory_space<vmem>>, vector<49x768xf32>,
    return
  }
  func.func @transform_0(%arg0: i32) -> (i32, i32) {
    %c0_i32 = arith.constant 0 : i32
    %c0_i32_0 = arith.constant 0 : i32
    return %arg0, %c0_i32 : i32, i32
  }
  func.func @transform_1(%arg0: i32) -> (i32, i32) {
    %c0_i32 = arith.constant 0 : i32
    %c0_i32_0 = arith.constant 0 : i32
    return %arg0, %c0_i32 : i32, i32
  }
}

</mosaic_0001>

<llo_original>
// kernel: tpu_custom_call.1
$region0: #{tpu_custom_call.1}
  #allocation0 [shape = 'u32[]', space=smem, size = 0x4, offset = 0x4, fixed_abs, tag = 'smem constant byte address 0x4 - core index']
  #allocation1 [shape = 'u32[144,128]{1,0:T(1,128)}', space=vmem, size = 0x12000, scoped, tag = 'internal scratch']
  %s0 = inlined_call_operand.hbm [shape: f32[49,768], index: 0, kind: input, shape index: {}]
  %s1 = inlined_call_operand.hbm [shape: f32[49,768], index: 1, kind: output, shape index: {}]
  %s2 = sld [smem:[#allocation0]]
  $region18: #{tpu_custom_call.1} parent=0
    _
  %s4 = ssub.s32 1, %s2
  %s5 = scalar_select 0, %s4, %s2
  $region1: #{tpu_custom_call.1} parent=0
    #allocation2 [shape = 'u8[172032]{0}', space=vmem, size = 0x2a000, scoped, tag = 'input window, operand 0, single buffered']
    #allocation3 [shape = 's32[1]{0}', space=sflag, size = 0x4, scoped, tag = 'scoped memory for tpu_custom_call.1']
    #allocation4 [shape = 's32[1]{0}', space=sflag, size = 0x4, scoped, tag = 'scoped memory for tpu_custom_call.1']
    #allocation5 [shape = 'u8[172032]{0}', space=vmem, size = 0x2a000, scoped, tag = 'output window, operand 0, single buffered']
    %6 = vsyncpa [#allocation3], 0
    %7 = vsyncpa [#allocation4], 0
    // Predicated region
    $region2: #{tpu_custom_call.1} parent=1 // pred_check
      _
    $region3: #{tpu_custom_call.1} parent=1 // pred_check_branch
      %9 = sbr.rel (0) target = $region5
    $region4: #{tpu_custom_call.1} parent=1 // pred_region
      %s11 = ssub.s32 5376, 5376
      %12 = vsyncadd [#allocation3], %s11
      %s13 = sshll.u32 [#allocation2], 4
      %s14 = int_to_ptr.vmem [resolvable:$true] %s13
      %19 = dma.hbm_to_vmem [thread:$0]  %s0, 5376, %s14, [#allocation3], 768, 768, 48
    $region5: #{tpu_custom_call.1} parent=1 // pred_fallthru
      _
    // Predicated region
    $region6: #{tpu_custom_call.1} parent=1 // pred_check
      _
    $region7: #{tpu_custom_call.1} parent=1 // pred_check_branch
      %21 = sbr.rel (0) target = $region9
    $region8: #{tpu_custom_call.1} parent=1 // pred_region
      %22 = dma.done [#allocation3], 5376
    $region9: #{tpu_custom_call.1} parent=1 // pred_fallthru
      _
    %v23 = vld [vmem:[#allocation2] sm:$0xff]
    %v24 = vld [vmem:[#allocation2 + $0x8] sm:$0xff]
    %v25 = vld [vmem:[#allocation2 + $0x10] sm:$0xff]
    %v26 = vld [vmem:[#allocation2 + $0x18] sm:$0xff]
    %v27 = vld [vmem:[#allocation2 + $0x20] sm:$0xff]
    %v28 = vld [vmem:[#allocation2 + $0x28] sm:$0xff]
    %v29 = vld [vmem:[#allocation2 + $0x30] sm:$0xff]
    %v30 = vld [vmem:[#allocation2 + $0x38] sm:$0xff]
    %v31 = vld [vmem:[#allocation2 + $0x40] sm:$0xff]
    %v32 = vld [vmem:[#allocation2 + $0x48] sm:$0xff]
    %v33 = vld [vmem:[#allocation2 + $0x50] sm:$0xff]
    %v34 = vld [vmem:[#allocation2 + $0x58] sm:$0xff]
    %v35 = vld [vmem:[#allocation2 + $0x60] sm:$0xff]
    %v36 = vld [vmem:[#allocation2 + $0x68] sm:$0xff]
    %v37 = vld [vmem:[#allocation2 + $0x70] sm:$0xff]
    %v38 = vld [vmem:[#allocation2 + $0x78] sm:$0xff]
    %v39 = vld [vmem:[#allocation2 + $0x80] sm:$0xff]
    %v40 = vld [vmem:[#allocation2 + $0x88] sm:$0xff]
    %v41 = vld [vmem:[#allocation2 + $0x90] sm:$0xff]
    %v42 = vld [vmem:[#allocation2 + $0x98] sm:$0xff]
    %v43 = vld [vmem:[#allocation2 + $0xa0] sm:$0xff]
    %v44 = vld [vmem:[#allocation2 + $0xa8] sm:$0xff]
    %v45 = vld [vmem:[#allocation2 + $0xb0] sm:$0xff]
    %v46 = vld [vmem:[#allocation2 + $0xb8] sm:$0xff]
    %v47 = vld [vmem:[#allocation2 + $0xc0] sm:$0xff]
    %v48 = vld [vmem:[#allocation2 + $0xc8] sm:$0xff]
    %v49 = vld [vmem:[#allocation2 + $0xd0] sm:$0xff]
    %v50 = vld [vmem:[#allocation2 + $0xd8] sm:$0xff]
    %v51 = vld [vmem:[#allocation2 + $0xe0] sm:$0xff]
    %v52 = vld [vmem:[#allocation2 + $0xe8] sm:$0xff]
    %v53 = vld [vmem:[#allocation2 + $0xf0] sm:$0xff]
    %v54 = vld [vmem:[#allocation2 + $0xf8] sm:$0xff]
    %v55 = vld [vmem:[#allocation2 + $0x100] sm:$0xff]
    %v56 = vld [vmem:[#allocation2 + $0x108] sm:$0xff]
    %v57 = vld [vmem:[#allocation2 + $0x110] sm:$0xff]
    %v58 = vld [vmem:[#allocation2 + $0x118] sm:$0xff]
    %v59 = vld [vmem:[#allocation2 + $0x120] sm:$0x1]
    %v60 = vld [vmem:[#allocation2 + $0x128] sm:$0x1]
    %v61 = vld [vmem:[#allocation2 + $0x130] sm:$0x1]
    %v62 = vld [vmem:[#allocation2 + $0x138] sm:$0x1]
    %v63 = vld [vmem:[#allocation2 + $0x140] sm:$0x1]
    %v64 = vld [vmem:[#allocation2 + $0x148] sm:$0x1]
    %65 = vst [vmem:[#allocation5] sm:$0xff] %v23
    %66 = vst [vmem:[#allocation5 + $0x8] sm:$0xff] %v24
    %67 = vst [vmem:[#allocation5 + $0x10] sm:$0xff] %v25
    %68 = vst [vmem:[#allocation5 + $0x18] sm:$0xff] %v26
    %69 = vst [vmem:[#allocation5 + $0x20] sm:$0xff] %v27
    %70 = vst [vmem:[#allocation5 + $0x28] sm:$0xff] %v28
    %71 = vst [vmem:[#allocation5 + $0x30] sm:$0xff] %v29
    %72 = vst [vmem:[#allocation5 + $0x38] sm:$0xff] %v30
    %73 = vst [vmem:[#allocation5 + $0x40] sm:$0xff] %v31
    %74 = vst [vmem:[#allocation5 + $0x48] sm:$0xff] %v32
    %75 = vst [vmem:[#allocation5 + $0x50] sm:$0xff] %v33
    %76 = vst [vmem:[#allocation5 + $0x58] sm:$0xff] %v34
    %77 = vst [vmem:[#allocation5 + $0x60] sm:$0xff] %v35
    %78 = vst [vmem:[#allocation5 + $0x68] sm:$0xff] %v36
    %79 = vst [vmem:[#allocation5 + $0x70] sm:$0xff] %v37
    %80 = vst [vmem:[#allocation5 + $0x78] sm:$0xff] %v38
    %81 = vst [vmem:[#allocation5 + $0x80] sm:$0xff] %v39
    %82 = vst [vmem:[#allocation5 + $0x88] sm:$0xff] %v40
    %83 = vst [vmem:[#allocation5 + $0x90] sm:$0xff] %v41
    %84 = vst [vmem:[#allocation5 + $0x98] sm:$0xff] %v42
    %85 = vst [vmem:[#allocation5 + $0xa0] sm:$0xff] %v43
    %86 = vst [vmem:[#allocation5 + $0xa8] sm:$0xff] %v44
    %87 = vst [vmem:[#allocation5 + $0xb0] sm:$0xff] %v45
    %88 = vst [vmem:[#allocation5 + $0xb8] sm:$0xff] %v46
    %89 = vst [vmem:[#allocation5 + $0xc0] sm:$0xff] %v47
    %90 = vst [vmem:[#allocation5 + $0xc8] sm:$0xff] %v48
    %91 = vst [vmem:[#allocation5 + $0xd0] sm:$0xff] %v49
    %92 = vst [vmem:[#allocation5 + $0xd8] sm:$0xff] %v50
    %93 = vst [vmem:[#allocation5 + $0xe0] sm:$0xff] %v51
    %94 = vst [vmem:[#allocation5 + $0xe8] sm:$0xff] %v52
    %95 = vst [vmem:[#allocation5 + $0xf0] sm:$0xff] %v53
    %96 = vst [vmem:[#allocation5 + $0xf8] sm:$0xff] %v54
    %97 = vst [vmem:[#allocation5 + $0x100] sm:$0xff] %v55
    %98 = vst [vmem:[#allocation5 + $0x108] sm:$0xff] %v56
    %99 = vst [vmem:[#allocation5 + $0x110] sm:$0xff] %v57
    %100 = vst [vmem:[#allocation5 + $0x118] sm:$0xff] %v58
    %101 = vst [vmem:[#allocation5 + $0x120] sm:$0x1] %v59
    %102 = vst [vmem:[#allocation5 + $0x128] sm:$0x1] %v60
    %103 = vst [vmem:[#allocation5 + $0x130] sm:$0x1] %v61
    %104 = vst [vmem:[#allocation5 + $0x138] sm:$0x1] %v62
    %105 = vst [vmem:[#allocation5 + $0x140] sm:$0x1] %v63
    %106 = vst [vmem:[#allocation5 + $0x148] sm:$0x1] %v64
    // Predicated region
    $region10: #{tpu_custom_call.1} parent=1 // pred_check
      _
    $region11: #{tpu_custom_call.1} parent=1 // pred_check_branch
      %108 = sbr.rel (0) target = $region13
    $region12: #{tpu_custom_call.1} parent=1 // pred_region
      %s110 = ssub.s32 5376, 5376
      %111 = vsyncadd [#allocation4], %s110
      %s112 = sshll.u32 [#allocation5], 4
      %s113 = int_to_ptr.vmem [resolvable:$true] %s112
      %118 = dma.vmem_to_hbm [thread:$0]  %s113, 5376, %s1, [#allocation4], 768, 768, 48
    $region13: #{tpu_custom_call.1} parent=1 // pred_fallthru
      _
    // Predicated region
    $region14: #{tpu_custom_call.1} parent=1 // pred_check
      _
    $region15: #{tpu_custom_call.1} parent=1 // pred_check_branch
      %120 = sbr.rel (0) target = $region17
    $region16: #{tpu_custom_call.1} parent=1 // pred_region
      %121 = dma.done [#allocation4], 5376
    $region17: #{tpu_custom_call.1} parent=1 // pred_fallthru
      _
    %122 = vsyncpa [#allocation3], 1
    %123 = vsyncpa [#allocation4], 1

</llo_original>
